<compile_context>
chip_gen: v7x
topology: tpu7x:2x2x1
jax: 0.10.0
libtpu: 0.0.40
codegen_flags: <defaults>
</compile_context>

<pallas_src>
import math
import jax
import jax.numpy as jnp
from jax import lax
from jax.experimental import pallas as pl
from jax.experimental.pallas import tpu as pltpu

_NEG_BIG = 1e30


def _biattention_kernel(x_ref, mem_ref, mask_ref, w_in_ref, w_mem_ref, scale_ref, o_ref):
    # Per grid step (one batch element):
    #   x_ref:     (1, Li, D)    input
    #   mem_ref:   (1, Lm, D)    memory
    #   mask_ref:  (1, 1, Lm)    memory mask (1 = keep, 0 = masked)
    #   w_in_ref:  (1, D)        input_linear weight  (nn.Linear(D, 1, bias=False))
    #   w_mem_ref: (1, D)        memory_linear weight
    #   scale_ref: (1, D)        dot_scale
    #   o_ref:     (1, Li, 4*D)  concat([x, out1, x*out1, out2*out1], -1)
    x = x_ref[0].astype(jnp.float32)            # (Li, D)
    mem = mem_ref[0].astype(jnp.float32)        # (Lm, D)
    msk = mask_ref[0].astype(jnp.float32)       # (1, Lm)
    w_in = w_in_ref[...].astype(jnp.float32)    # (1, D)
    w_mem = w_mem_ref[...].astype(jnp.float32)  # (1, D)
    scale = scale_ref[...].astype(jnp.float32)  # (1, D)

    # contract the feature (last) dim of both operands -> no materialized transpose
    cdims = (((1,), (1,)), ((), ()))

    # input_linear(x)  -> (Li, 1)
    input_dot = lax.dot_general(x, w_in, cdims, preferred_element_type=jnp.float32)
    # memory_linear(mem) laid out directly as (1, Lm) on lanes
    memory_dot = lax.dot_general(w_mem, mem, cdims, preferred_element_type=jnp.float32)
    # (x * dot_scale) @ mem^T  -> (Li, Lm), MXU, no mem.T materialized
    cross_dot = lax.dot_general(x * scale, mem, cdims, preferred_element_type=jnp.float32)

    att = input_dot + memory_dot + cross_dot
    att = att - _NEG_BIG * (1.0 - msk)          # broadcast (1, Lm) over query rows

    # weight_one = softmax(att, -1), numerically stable
    row_max = jnp.max(att, axis=-1, keepdims=True)                        # (Li, 1)
    e1 = jnp.exp(att - row_max)
    inv1 = pl.reciprocal(jnp.sum(e1, axis=-1, keepdims=True), approx=True)
    weight_one = e1 * inv1                                                # (Li, Lm)

    # output_one = weight_one @ mem  -> (Li, D)
    output_one = jnp.dot(weight_one, mem, preferred_element_type=jnp.float32)

    # weight_two = softmax(att.max(-1)) over the Li axis; keep it as a column (Li, 1)
    # (att.max(-1) is exactly row_max, already computed above).
    col_max = jnp.max(row_max, axis=0, keepdims=True)                     # (1, 1)
    e2 = jnp.exp(row_max - col_max)                                       # (Li, 1)
    inv2 = pl.reciprocal(jnp.sum(e2, axis=0, keepdims=True), approx=True)
    weight_two = e2 * inv2                                                # (Li, 1)
    # output_two = weight_two^T @ x  -> (1, D), done as broadcast-mul + sublane reduce
    output_two = jnp.sum(weight_two * x, axis=0, keepdims=True)           # (1, D)

    # single lane-dense store of the concatenated result (Li, 4*D)
    out = jnp.concatenate(
        [x, output_one, x * output_one, output_two * output_one], axis=-1)
    o_ref[0] = out.astype(o_ref.dtype)


def bi_attention(inp, mem, mask, w_in, w_mem, dot_scale):
    """inp:  (bsz, input_len, D) f32
       mem:  (bsz, memory_len, D) f32
       mask: (bsz, memory_len) f32 {0,1}
       w_in, w_mem: (1, D) f32     dot_scale: (D,) f32
       returns: (bsz, input_len, 4*D) f32"""
    bsz, input_len, D = inp.shape
    _, memory_len, _ = mem.shape

    mask3 = mask.reshape(bsz, 1, memory_len).astype(jnp.float32)
    scale2 = dot_scale.reshape(1, D).astype(jnp.float32)

    return pl.pallas_call(
        _biattention_kernel,
        out_shape=jax.ShapeDtypeStruct((bsz, input_len, 4 * D), jnp.float32),
        grid_spec=pltpu.PrefetchScalarGridSpec(
            num_scalar_prefetch=0,
            grid=(bsz,),
            in_specs=[
                pl.BlockSpec((1, input_len, D), lambda b: (b, 0, 0)),    # input[b]
                pl.BlockSpec((1, memory_len, D), lambda b: (b, 0, 0)),   # memory[b]
                pl.BlockSpec((1, 1, memory_len), lambda b: (b, 0, 0)),   # mask[b]
                pl.BlockSpec((1, D), lambda b: (0, 0)),                  # input_linear W
                pl.BlockSpec((1, D), lambda b: (0, 0)),                  # memory_linear W
                pl.BlockSpec((1, D), lambda b: (0, 0)),                  # dot_scale
            ],
            out_specs=pl.BlockSpec((1, input_len, 4 * D), lambda b: (b, 0, 0)),
        ),
        compiler_params=pltpu.CompilerParams(
            dimension_semantics=("parallel",)),
    )(inp, mem, mask3, w_in, w_mem, scale2)


def _reference(inp, mem, mask, w_in, w_mem, dot_scale):
    # pure-JAX reference of the PyTorch forward (eval mode: LockedDropout is identity)
    input_dot = jnp.einsum('bid,od->bio', inp, w_in)                    # (B, Li, 1)
    memory_dot = jnp.einsum('bjd,od->boj', mem, w_mem)                  # (B, 1, Lm)
    cross_dot = jnp.einsum('bid,bjd->bij', inp * dot_scale, mem)        # (B, Li, Lm)
    att = input_dot + memory_dot + cross_dot
    att = att - _NEG_BIG * (1.0 - mask[:, None, :])
    weight_one = jax.nn.softmax(att, axis=-1)
    output_one = jnp.einsum('bij,bjd->bid', weight_one, mem)
    weight_two = jax.nn.softmax(jnp.max(att, axis=-1), axis=-1)[:, None, :]
    output_two = jnp.einsum('bij,bjd->bid', weight_two, inp)            # (B, 1, D)
    return jnp.concatenate(
        [inp, output_one, inp * output_one, output_two * output_one], axis=-1)


if __name__ == "__main__":
    bsz, input_len, memory_len, input_size = 2, 16, 24, 32   # 4*D = 128 -> lane-dense output

    key = jax.random.PRNGKey(0)
    k_i, k_m, k_wi, k_wm, k_s = jax.random.split(key, 5)

    inp = jax.random.normal(k_i, (bsz, input_len, input_size), dtype=jnp.float32)
    mem = jax.random.normal(k_m, (bsz, memory_len, input_size), dtype=jnp.float32)

    # mask: 1 = valid memory position; second batch element has its last 8 positions masked
    mask = jnp.ones((bsz, memory_len), dtype=jnp.float32)
    mask = mask.at[1, memory_len - 8:].set(0.0)

    # parameter init mimicking the PyTorch module
    bound = 1.0 / math.sqrt(input_size)
    w_in = jax.random.uniform(k_wi, (1, input_size), minval=-bound, maxval=bound,
                              dtype=jnp.float32)
    w_mem = jax.random.uniform(k_wm, (1, input_size), minval=-bound, maxval=bound,
                               dtype=jnp.float32)
    dot_scale = jax.random.uniform(k_s, (input_size,), minval=bound, maxval=1.0,
                                   dtype=jnp.float32)

    out = bi_attention(inp, mem, mask, w_in, w_mem, dot_scale)
    out = jax.block_until_ready(out)

    ref = _reference(inp, mem, mask, w_in, w_mem, dot_scale)
    assert out.shape == (bsz, input_len, 4 * input_size)
    # tolerance loosened slightly: softmax denominators use pl.reciprocal(approx=True) (EUP)
    assert jnp.allclose(out, ref, atol=1e-2, rtol=1e-2), "mismatch vs reference"

    print("KERNEL_OK")
</pallas_src>

<mosaic_0001>
module attributes {stable_mosaic.version = 11 : i64} {
  func.func @_biattention_kernel(%arg0: i32, %arg1: memref<1x16x32xf32, #tpu.memory_space<vmem>>, %arg2: memref<1x24x32xf32, #tpu.memory_space<vmem>>, %arg3: memref<1x1x24xf32, #tpu.memory_space<vmem>>, %arg4: memref<1x32xf32, #tpu.memory_space<vmem>>, %arg5: memref<1x32xf32, #tpu.memory_space<vmem>>, %arg6: memref<1x32xf32, #tpu.memory_space<vmem>>, %arg7: memref<1x16x128xf32, #tpu.memory_space<vmem>>) attributes {dimension_semantics = [#tpu.dimension_semantics<parallel>], iteration_bounds = array<i64: 2>, scalar_prefetch = 0 : i64, scratch_operands = 0 : i64, tpu.core_type = #tpu.core_type<tc>, window_params = [{transform_indices = @transform_0, window_bounds = array<i64: 1, 16, 32>}, {transform_indices = @transform_1, window_bounds = array<i64: 1, 24, 32>}, {transform_indices = @transform_2, window_bounds = array<i64: 1, 1, 24>}, {pipeline_mode = #tpu.pipeline_mode<synchronous>, transform_indices = @transform_3, window_bounds = array<i64: 1, 32>}, {pipeline_mode = #tpu.pipeline_mode<synchronous>, transform_indices = @transform_4, window_bounds = array<i64: 1, 32>}, {pipeline_mode = #tpu.pipeline_mode<synchronous>, transform_indices = @transform_5, window_bounds = array<i64: 1, 32>}, {transform_indices = @transform_6, window_bounds = array<i64: 1, 16, 128>}]} {
    %c0 = arith.constant 0 : index
    %c0_0 = arith.constant 0 : index
    %c0_1 = arith.constant 0 : index
    %0 = vector.load %arg1[%c0, %c0_0, %c0_1] : memref<1x16x32xf32, #tpu.memory_space<vmem>>, vector<1x16x32xf32>
    %1 = vector.shape_cast %0 : vector<1x16x32xf32> to vector<16x32xf32>
    %c0_2 = arith.constant 0 : index
    %c0_3 = arith.constant 0 : index
    %c0_4 = arith.constant 0 : index
    %2 = vector.load %arg2[%c0_2, %c0_3, %c0_4] : memref<1x24x32xf32, #tpu.memory_space<vmem>>, vector<1x24x32xf32>
    %3 = vector.shape_cast %2 : vector<1x24x32xf32> to vector<24x32xf32>
    %c0_5 = arith.constant 0 : index
    %c0_6 = arith.constant 0 : index
    %c0_7 = arith.constant 0 : index
    %4 = vector.load %arg3[%c0_5, %c0_6, %c0_7] : memref<1x1x24xf32, #tpu.memory_space<vmem>>, vector<1x1x24xf32>
    %5 = vector.shape_cast %4 : vector<1x1x24xf32> to vector<1x24xf32>
    %c0_8 = arith.constant 0 : index
    %c0_9 = arith.constant 0 : index
    %6 = vector.load %arg4[%c0_8, %c0_9] : memref<1x32xf32, #tpu.memory_space<vmem>>, vector<1x32xf32>
    %c0_10 = arith.constant 0 : index
    %c0_11 = arith.constant 0 : index
    %7 = vector.load %arg5[%c0_10, %c0_11] : memref<1x32xf32, #tpu.memory_space<vmem>>, vector<1x32xf32>
    %c0_12 = arith.constant 0 : index
    %c0_13 = arith.constant 0 : index
    %8 = vector.load %arg6[%c0_12, %c0_13] : memref<1x32xf32, #tpu.memory_space<vmem>>, vector<1x32xf32>
    %cst = arith.constant dense<0.000000e+00> : vector<16x1xf32>
    %9 = tpu.matmul %1, %6, %cst {dimension_numbers = #tpu.dot_dimension_numbers<[1], [1], [0], [0], [0, 0, 1, 0], [], []>} : vector<16x32xf32>, vector<1x32xf32>, vector<16x1xf32> -> vector<16x1xf32>
    %cst_14 = arith.constant dense<0.000000e+00> : vector<1x24xf32>
    %10 = tpu.matmul %7, %3, %cst_14 {dimension_numbers = #tpu.dot_dimension_numbers<[1], [1], [0], [0], [0, 0, 1, 0], [], []>} : vector<1x32xf32>, vector<24x32xf32>, vector<1x24xf32> -> vector<1x24xf32>
    %11 = vector.broadcast %8 : vector<1x32xf32> to vector<16x32xf32>
    %12 = arith.mulf %1, %11 : vector<16x32xf32>
    %cst_15 = arith.constant dense<0.000000e+00> : vector<16x24xf32>
    %13 = tpu.matmul %12, %3, %cst_15 {dimension_numbers = #tpu.dot_dimension_numbers<[1], [1], [0], [0], [0, 0, 1, 0], [], []>} : vector<16x32xf32>, vector<24x32xf32>, vector<16x24xf32> -> vector<16x24xf32>
    %14 = vector.broadcast %9 : vector<16x1xf32> to vector<16x24xf32>
    %15 = vector.broadcast %10 : vector<1x24xf32> to vector<16x24xf32>
    %16 = arith.addf %14, %15 : vector<16x24xf32>
    %17 = arith.addf %16, %13 : vector<16x24xf32>
    %cst_16 = arith.constant 1.000000e+00 : f32
    %18 = vector.broadcast %cst_16 : f32 to vector<1x24xf32>
    %19 = arith.subf %18, %5 : vector<1x24xf32>
    %cst_17 = arith.constant 1.000000e+30 : f32
    %20 = vector.broadcast %cst_17 : f32 to vector<1x24xf32>
    %21 = arith.mulf %20, %19 : vector<1x24xf32>
    %22 = vector.broadcast %21 : vector<1x24xf32> to vector<16x24xf32>
    %23 = arith.subf %17, %22 : vector<16x24xf32>
    %cst_18 = arith.constant dense<0xFF800000> : vector<16xf32>
    %24 = vector.multi_reduction <maximumf>, %23, %cst_18 [1] : vector<16x24xf32> to vector<16xf32>
    %25 = vector.shape_cast %24 : vector<16xf32> to vector<16x1xf32>
    %26 = vector.broadcast %25 : vector<16x1xf32> to vector<16x24xf32>
    %27 = arith.subf %23, %26 : vector<16x24xf32>
    %28 = math.exp %27 : vector<16x24xf32>
    %cst_19 = arith.constant dense<0.000000e+00> : vector<16xf32>
    %29 = vector.multi_reduction <add>, %28, %cst_19 [1] : vector<16x24xf32> to vector<16xf32>
    %30 = vector.shape_cast %29 : vector<16xf32> to vector<16x1xf32>
    %31 = tpu.reciprocal %30 {approx = true} : vector<16x1xf32> -> vector<16x1xf32>
    %32 = vector.broadcast %31 : vector<16x1xf32> to vector<16x24xf32>
    %33 = arith.mulf %28, %32 : vector<16x24xf32>
    %cst_20 = arith.constant dense<0.000000e+00> : vector<16x32xf32>
    %34 = tpu.matmul %33, %3, %cst_20 {dimension_numbers = #tpu.dot_dimension_numbers<[1], [0], [0], [1], [0, 0, 1, 1], [], []>} : vector<16x24xf32>, vector<24x32xf32>, vector<16x32xf32> -> vector<16x32xf32>
    %cst_21 = arith.constant dense<0xFF800000> : vector<1xf32>
    %35 = vector.multi_reduction <maximumf>, %25, %cst_21 [0] : vector<16x1xf32> to vector<1xf32>
    %36 = vector.shape_cast %35 : vector<1xf32> to vector<1x1xf32>
    %37 = vector.broadcast %36 : vector<1x1xf32> to vector<16x1xf32>
    %38 = arith.subf %25, %37 : vector<16x1xf32>
    %39 = math.exp %38 : vector<16x1xf32>
    %cst_22 = arith.constant dense<0.000000e+00> : vector<1xf32>
    %40 = vector.multi_reduction <add>, %39, %cst_22 [0] : vector<16x1xf32> to vector<1xf32>
    %41 = vector.shape_cast %40 : vector<1xf32> to vector<1x1xf32>
    %42 = tpu.reciprocal %41 {approx = true} : vector<1x1xf32> -> vector<1x1xf32>
    %43 = vector.broadcast %42 : vector<1x1xf32> to vector<16x1xf32>
    %44 = arith.mulf %39, %43 : vector<16x1xf32>
    %45 = vector.broadcast %44 : vector<16x1xf32> to vector<16x32xf32>
    %46 = arith.mulf %45, %1 : vector<16x32xf32>
    %cst_23 = arith.constant dense<0.000000e+00> : vector<32xf32>
    %47 = vector.multi_reduction <add>, %46, %cst_23 [0] : vector<16x32xf32> to vector<32xf32>
    %48 = vector.shape_cast %47 : vector<32xf32> to vector<1x32xf32>
    %49 = arith.mulf %1, %34 : vector<16x32xf32>
    %50 = vector.broadcast %48 : vector<1x32xf32> to vector<16x32xf32>
    %51 = arith.mulf %50, %34 : vector<16x32xf32>
    %52 = tpu.concatenate %1, %34, %49, %51 in 1 : vector<16x32xf32>, vector<16x32xf32>, vector<16x32xf32>, vector<16x32xf32> -> vector<16x128xf32>
    %c0_24 = arith.constant 0 : index
    %c0_25 = arith.constant 0 : index
    %c0_26 = arith.constant 0 : index
    %53 = vector.load %arg7[%c0_24, %c0_25, %c0_26] : memref<1x16x128xf32, #tpu.memory_space<vmem>>, vector<1x16x128xf32>
    %54 = vector.shape_cast %53 : vector<1x16x128xf32> to vector<16x128xf32>
    %55 = vector.shape_cast %52 : vector<16x128xf32> to vector<1x16x128xf32>
    tpu.vector_store %arg7[%c0_24, %c0_25, %c0_26], %55 {strides = array<i32>} : memref<1x16x128xf32, #tpu.memory_space<vmem>>, vector<1x16x128xf32>,
    return
  }
  func.func @transform_0(%arg0: i32) -> (i32, i32, i32) {
    %c0_i32 = arith.constant 0 : i32
    %c0_i32_0 = arith.constant 0 : i32
    %c0_i32_1 = arith.constant 0 : i32
    return %arg0, %c0_i32, %c0_i32_0 : i32, i32, i32
  }
  func.func @transform_1(%arg0: i32) -> (i32, i32, i32) {
    %c0_i32 = arith.constant 0 : i32
    %c0_i32_0 = arith.constant 0 : i32
    %c0_i32_1 = arith.constant 0 : i32
    return %arg0, %c0_i32, %c0_i32_0 : i32, i32, i32
  }
  func.func @transform_2(%arg0: i32) -> (i32, i32, i32) {
    %c0_i32 = arith.constant 0 : i32
    %c0_i32_0 = arith.constant 0 : i32
    %c0_i32_1 = arith.constant 0 : i32
    return %arg0, %c0_i32, %c0_i32_0 : i32, i32, i32
  }
  func.func @transform_3(%arg0: i32) -> (i32, i32) {
    %c0_i32 = arith.constant 0 : i32
    %c0_i32_0 = arith.constant 0 : i32
    %c0_i32_1 = arith.constant 0 : i32
    return %c0_i32, %c0_i32_0 : i32, i32
  }
  func.func @transform_4(%arg0: i32) -> (i32, i32) {
    %c0_i32 = arith.constant 0 : i32
    %c0_i32_0 = arith.constant 0 : i32
    %c0_i32_1 = arith.constant 0 : i32
    return %c0_i32, %c0_i32_0 : i32, i32
  }
  func.func @transform_5(%arg0: i32) -> (i32, i32) {
    %c0_i32 = arith.constant 0 : i32
    %c0_i32_0 = arith.constant 0 : i32
    %c0_i32_1 = arith.constant 0 : i32
    return %c0_i32, %c0_i32_0 : i32, i32
  }
  func.func @transform_6(%arg0: i32) -> (i32, i32, i32) {
    %c0_i32 = arith.constant 0 : i32
    %c0_i32_0 = arith.constant 0 : i32
    %c0_i32_1 = arith.constant 0 : i32
    return %arg0, %c0_i32, %c0_i32_0 : i32, i32, i32
  }
}

</mosaic_0001>

<llo_original>
// kernel: tpu_custom_call.1
$region0: #{tpu_custom_call.1}
  #allocation0 [shape = 'u32[]', space=smem, size = 0x4, offset = 0x4, fixed_abs, tag = 'smem constant byte address 0x4 - core index']
  #allocation1 [shape = 'u32[144,128]{1,0:T(1,128)}', space=vmem, size = 0x12000, scoped, tag = 'internal scratch']
  %s0 = inlined_call_operand.hbm [shape: f32[2,16,32], index: 0, kind: input, shape index: {}]
  %s1 = inlined_call_operand.hbm [shape: f32[2,24,32], index: 1, kind: input, shape index: {}]
  %s2 = inlined_call_operand.vmem [shape: f32[2,1,24], index: 2, kind: input, shape index: {}]
  %s3 = inlined_call_operand.vmem [shape: f32[1,32], index: 3, kind: input, shape index: {}]
  %s4 = inlined_call_operand.vmem [shape: f32[1,32], index: 4, kind: input, shape index: {}]
  %s5 = inlined_call_operand.vmem [shape: f32[1,32], index: 5, kind: input, shape index: {}]
  %s6 = inlined_call_operand.hbm [shape: f32[2,16,128], index: 6, kind: output, shape index: {}]
  %s7 = sld [smem:[#allocation0]]
  $region65: #{tpu_custom_call.1} parent=0
    _
  %s9 = ssub.s32 1, %s7
  %s10 = scalar_select 0, %s9, %s7
  $region1: #{tpu_custom_call.1} parent=0
    #allocation2 [shape = 'u8[16384]{0}', space=vmem, size = 0x4000, scoped, tag = 'input window, operand 0']
    #allocation3 [shape = 's32[2]{0}', space=sflag, size = 0x8, scoped, tag = 'scoped memory for tpu_custom_call.1']
    #allocation4 [shape = 's32[2]{0}', space=sflag, size = 0x8, scoped, tag = 'scoped memory for tpu_custom_call.1']
    #allocation5 [shape = 'u8[24576]{0}', space=vmem, size = 0x6000, scoped, tag = 'input window, operand 1']
    #allocation6 [shape = 's32[2]{0}', space=sflag, size = 0x8, scoped, tag = 'scoped memory for tpu_custom_call.1']
    #allocation7 [shape = 'u8[16384]{0}', space=vmem, size = 0x4000, scoped, tag = 'output window, operand 0']
    %11 = vsyncpa [#allocation3], 0
    %s12 = scalar_lea.sflag [#allocation3], 1
    %13 = vsyncpa %s12, 0
    %14 = vsyncpa [#allocation6], 0
    %s15 = scalar_lea.sflag [#allocation6], 1
    %16 = vsyncpa %s15, 0
    %17 = vsyncpa [#allocation4], 0
    %s18 = scalar_lea.sflag [#allocation4], 1
    %19 = vsyncpa %s18, 0
    loop: start=0, step=1, limit=4
    $region2: #{tpu_custom_call.1} parent=1 // loop_pre_header
      _
    $region3: #{tpu_custom_call.1} parent=1 // loop_header
      %s21 = sphi 0, %s25
      %p22 = scmp.ge.s32.totalorder %s21, 4
      %s31 = sphi 0, %s33
      %s34 = sphi 0, %s31
      %s35 = sphi 0, %s34
      %s51 = sphi 0, %s35
      %s57 = sphi 0, %s59
      %s60 = sphi 0, %s57
      %s61 = sphi 0, %s60
      %s77 = sphi 0, %s61
      %s83 = sphi 0, %s85
      %s86 = sphi 0, %s83
      %s87 = sphi 0, %s86
      %s103 = sphi 0, %s87
      %s107 = sphi 0, %s107
      %s109 = sphi 0, %s107
      %s110 = sphi 0, %s109
      %s124 = sphi 0, %s110
      %s128 = sphi 0, %s128
      %s130 = sphi 0, %s128
      %s131 = sphi 0, %s130
      %s145 = sphi 0, %s131
      %s149 = sphi 0, %s149
      %s151 = sphi 0, %s149
      %s152 = sphi 0, %s151
      %s166 = sphi 0, %s152
      %s172 = sphi 0, %s174
      %s175 = sphi 0, %s172
      %s176 = sphi 0, %s175
      %s192 = sphi 0, %s176
    $region4: #{tpu_custom_call.1} parent=1 // loop_header_branch
      %24 = sbr.rel (%p22) target = $region8
    $region5: #{tpu_custom_call.1} parent=1 // loop_body
      %s26 = ssub.s32 %s21, 1
      %s27 = ssub.s32 %s21, 2
      %s28 = sadd.s32 %s21, 1
      %s29 = ssub.s32 %s21, %s28
      %p30 = scmp.eq.s32.totalorder %s29, 0
      %s32 = sadd.s32 %s31, 1
      %s33 = scalar_select %p30, %s31, %s32
      %p36 = pneg %p30
      %p37 = scmp.eq.s32.totalorder %s21, 1
      %p38 = por %p36, %p37
      %p39 = scmp.ne.s32.totalorder %s31, %s34
      %p40 = scmp.eq.s32.totalorder %s21, 0
      %p41 = por %p39, %p40
      %p42 = scmp.ne.s32.totalorder %s31, %s34
      %p43 = scmp.eq.s32.totalorder %s26, 1
      %p44 = por %p42, %p43
      %p45 = scmp.ne.s32.totalorder %s34, %s35
      %p46 = scmp.eq.s32.totalorder %s26, 0
      %p47 = por %p45, %p46
      %p48 = scmp.ne.s32.totalorder %s34, %s35
      %p49 = scmp.eq.s32.totalorder %s27, 1
      %p50 = por %p48, %p49
      %p52 = scmp.ne.s32.totalorder %s35, %s51
      %p53 = scmp.eq.s32.totalorder %s27, 0
      %p54 = por %p52, %p53
      %s55 = ssub.s32 %s21, %s28
      %p56 = scmp.eq.s32.totalorder %s55, 0
      %s58 = sadd.s32 %s57, 1
      %s59 = scalar_select %p56, %s57, %s58
      %p62 = pneg %p56
      %p63 = scmp.eq.s32.totalorder %s21, 1
      %p64 = por %p62, %p63
      %p65 = scmp.ne.s32.totalorder %s57, %s60
      %p66 = scmp.eq.s32.totalorder %s21, 0
      %p67 = por %p65, %p66
      %p68 = scmp.ne.s32.totalorder %s57, %s60
      %p69 = scmp.eq.s32.totalorder %s26, 1
      %p70 = por %p68, %p69
      %p71 = scmp.ne.s32.totalorder %s60, %s61
      %p72 = scmp.eq.s32.totalorder %s26, 0
      %p73 = por %p71, %p72
      %p74 = scmp.ne.s32.totalorder %s60, %s61
      %p75 = scmp.eq.s32.totalorder %s27, 1
      %p76 = por %p74, %p75
      %p78 = scmp.ne.s32.totalorder %s61, %s77
      %p79 = scmp.eq.s32.totalorder %s27, 0
      %p80 = por %p78, %p79
      %s81 = ssub.s32 %s21, %s28
      %p82 = scmp.eq.s32.totalorder %s81, 0
      %s84 = sadd.s32 %s83, 1
      %s85 = scalar_select %p82, %s83, %s84
      %p88 = pneg %p82
      %p89 = scmp.eq.s32.totalorder %s21, 1
      %p90 = por %p88, %p89
      %p91 = scmp.ne.s32.totalorder %s83, %s86
      %p92 = scmp.eq.s32.totalorder %s21, 0
      %p93 = por %p91, %p92
      %p94 = scmp.ne.s32.totalorder %s83, %s86
      %p95 = scmp.eq.s32.totalorder %s26, 1
      %p96 = por %p94, %p95
      %p97 = scmp.ne.s32.totalorder %s86, %s87
      %p98 = scmp.eq.s32.totalorder %s26, 0
      %p99 = por %p97, %p98
      %p100 = scmp.ne.s32.totalorder %s86, %s87
      %p101 = scmp.eq.s32.totalorder %s27, 1
      %p102 = por %p100, %p101
      %p104 = scmp.ne.s32.totalorder %s87, %s103
      %p105 = scmp.eq.s32.totalorder %s27, 0
      %p106 = por %p104, %p105
      %s108 = sadd.s32 %s107, 1
      %p111 = scmp.eq.s32.totalorder %s21, 1
      %p112 = scmp.ne.s32.totalorder %s107, %s109
      %p113 = scmp.eq.s32.totalorder %s21, 0
      %p114 = por %p112, %p113
      %p115 = scmp.ne.s32.totalorder %s107, %s109
      %p116 = scmp.eq.s32.totalorder %s26, 1
      %p117 = por %p115, %p116
      %p118 = scmp.ne.s32.totalorder %s109, %s110
      %p119 = scmp.eq.s32.totalorder %s26, 0
      %p120 = por %p118, %p119
      %p121 = scmp.ne.s32.totalorder %s109, %s110
      %p122 = scmp.eq.s32.totalorder %s27, 1
      %p123 = por %p121, %p122
      %p125 = scmp.ne.s32.totalorder %s110, %s124
      %p126 = scmp.eq.s32.totalorder %s27, 0
      %p127 = por %p125, %p126
      %s129 = sadd.s32 %s128, 1
      %p132 = scmp.eq.s32.totalorder %s21, 1
      %p133 = scmp.ne.s32.totalorder %s128, %s130
      %p134 = scmp.eq.s32.totalorder %s21, 0
      %p135 = por %p133, %p134
      %p136 = scmp.ne.s32.totalorder %s128, %s130
      %p137 = scmp.eq.s32.totalorder %s26, 1
      %p138 = por %p136, %p137
      %p139 = scmp.ne.s32.totalorder %s130, %s131
      %p140 = scmp.eq.s32.totalorder %s26, 0
      %p141 = por %p139, %p140
      %p142 = scmp.ne.s32.totalorder %s130, %s131
      %p143 = scmp.eq.s32.totalorder %s27, 1
      %p144 = por %p142, %p143
      %p146 = scmp.ne.s32.totalorder %s131, %s145
      %p147 = scmp.eq.s32.totalorder %s27, 0
      %p148 = por %p146, %p147
      %s150 = sadd.s32 %s149, 1
      %p153 = scmp.eq.s32.totalorder %s21, 1
      %p154 = scmp.ne.s32.totalorder %s149, %s151
      %p155 = scmp.eq.s32.totalorder %s21, 0
      %p156 = por %p154, %p155
      %p157 = scmp.ne.s32.totalorder %s149, %s151
      %p158 = scmp.eq.s32.totalorder %s26, 1
      %p159 = por %p157, %p158
      %p160 = scmp.ne.s32.totalorder %s151, %s152
      %p161 = scmp.eq.s32.totalorder %s26, 0
      %p162 = por %p160, %p161
      %p163 = scmp.ne.s32.totalorder %s151, %s152
      %p164 = scmp.eq.s32.totalorder %s27, 1
      %p165 = por %p163, %p164
      %p167 = scmp.ne.s32.totalorder %s152, %s166
      %p168 = scmp.eq.s32.totalorder %s27, 0
      %p169 = por %p167, %p168
      %s170 = ssub.s32 %s21, %s28
      %p171 = scmp.eq.s32.totalorder %s170, 0
      %s173 = sadd.s32 %s172, 1
      %s174 = scalar_select %p171, %s172, %s173
      %p177 = pneg %p171
      %p178 = scmp.eq.s32.totalorder %s21, 1
      %p179 = por %p177, %p178
      %p180 = scmp.ne.s32.totalorder %s172, %s175
      %p181 = scmp.eq.s32.totalorder %s21, 0
      %p182 = por %p180, %p181
      %p183 = scmp.ne.s32.totalorder %s172, %s175
      %p184 = scmp.eq.s32.totalorder %s26, 1
      %p185 = por %p183, %p184
      %p186 = scmp.ne.s32.totalorder %s175, %s176
      %p187 = scmp.eq.s32.totalorder %s26, 0
      %p188 = por %p186, %p187
      %p189 = scmp.ne.s32.totalorder %s175, %s176
      %p190 = scmp.eq.s32.totalorder %s27, 1
      %p191 = por %p189, %p190
      %p193 = scmp.ne.s32.totalorder %s176, %s192
      %p194 = scmp.eq.s32.totalorder %s27, 0
      %p195 = por %p193, %p194
      %p196 = scmp.le.s32.totalorder 1, %s21
      %p197 = scmp.lt.s32.totalorder %s21, 3
      %p198 = pnand %p196, %p197
      %p199 = pneg %p198
      // Predicated region
      $region9: #{tpu_custom_call.1} parent=5 // pred_check
        _
      $region10: #{tpu_custom_call.1} parent=5 // pred_check_branch
        %201 = sbr.rel (%p198) target = $region12
      $region11: #{tpu_custom_call.1} parent=5 // pred_region
        %s202 = ssub.s32 %s21, 1
        // Predicated region
        $region13: #{tpu_custom_call.1} parent=11 // pred_check
          %p203 = pneg %p120
        $region14: #{tpu_custom_call.1} parent=11 // pred_check_branch
          %205 = sbr.rel (%p203) target = $region16
        $region15: #{tpu_custom_call.1} parent=11 // pred_region
          _
        $region16: #{tpu_custom_call.1} parent=11 // pred_fallthru
          _
        // Predicated region
        $region17: #{tpu_custom_call.1} parent=11 // pred_check
          %p206 = pneg %p141
        $region18: #{tpu_custom_call.1} parent=11 // pred_check_branch
          %208 = sbr.rel (%p206) target = $region20
        $region19: #{tpu_custom_call.1} parent=11 // pred_region
          _
        $region20: #{tpu_custom_call.1} parent=11 // pred_fallthru
          _
        // Predicated region
        $region21: #{tpu_custom_call.1} parent=11 // pred_check
          %p209 = pneg %p162
        $region22: #{tpu_custom_call.1} parent=11 // pred_check_branch
          %211 = sbr.rel (%p209) target = $region24
        $region23: #{tpu_custom_call.1} parent=11 // pred_region
          _
        $region24: #{tpu_custom_call.1} parent=11 // pred_fallthru
          _
      $region12: #{tpu_custom_call.1} parent=5 // pred_fallthru
        _
      %p212 = scmp.lt.s32.totalorder %s21, 2
      // Predicated region
      $region25: #{tpu_custom_call.1} parent=5 // pred_check
        %p213 = pneg %p212
      $region26: #{tpu_custom_call.1} parent=5 // pred_check_branch
        %215 = sbr.rel (%p213) target = $region28
      $region27: #{tpu_custom_call.1} parent=5 // pred_region
        // Predicated region
        $region29: #{tpu_custom_call.1} parent=27 // pred_check
          %p216 = pneg %p41
        $region30: #{tpu_custom_call.1} parent=27 // pred_check_branch
          %218 = sbr.rel (%p216) target = $region32
        $region31: #{tpu_custom_call.1} parent=27 // pred_region
          %s219 = sand.u32 %s31, 1
          %s220 = scalar_lea.sflag [#allocation3], %s219
          %s221 = sand.u32 %s31, 1
          %s222 = smul.addr %s221, 16
          %s223 = scalar_lea.vmem [#allocation2], %s222
          %s225 = ssub.s32 256, 256
          %226 = vsyncadd %s220, %s225
          %s227 = smul.addr %s21, 2
          %s228 = smul.addr %s227, 128
          %s229 = scalar_lea.hbm %s0, %s228
          %s230 = sshll.u32 %s223, 4
          %s231 = int_to_ptr.vmem [resolvable:$true] %s230
          %236 = dma.hbm_to_vmem [thread:$0]  %s229, 256, %s231, %s220, 128, 128, 8
        $region32: #{tpu_custom_call.1} parent=27 // pred_fallthru
          _
        // Predicated region
        $region33: #{tpu_custom_call.1} parent=27 // pred_check
          %p237 = pneg %p67
        $region34: #{tpu_custom_call.1} parent=27 // pred_check_branch
          %239 = sbr.rel (%p237) target = $region36
        $region35: #{tpu_custom_call.1} parent=27 // pred_region
          %s240 = sand.u32 %s57, 1
          %s241 = scalar_lea.sflag [#allocation6], %s240
          %s242 = sand.u32 %s57, 1
          %s243 = smul.addr %s242, 24
          %s244 = scalar_lea.vmem [#allocation5], %s243
          %s246 = ssub.s32 384, 384
          %247 = vsyncadd %s241, %s246
          %s248 = smul.addr %s21, 3
          %s249 = smul.addr %s248, 128
          %s250 = scalar_lea.hbm %s1, %s249
          %s251 = sshll.u32 %s244, 4
          %s252 = int_to_ptr.vmem [resolvable:$true] %s251
          %257 = dma.hbm_to_vmem [thread:$0]  %s250, 384, %s252, %s241, 128, 128, 8
        $region36: #{tpu_custom_call.1} parent=27 // pred_fallthru
          _
        // Predicated region
        $region37: #{tpu_custom_call.1} parent=27 // pred_check
          %p258 = pneg %p93
        $region38: #{tpu_custom_call.1} parent=27 // pred_check_branch
          %260 = sbr.rel (%p258) target = $region40
        $region39: #{tpu_custom_call.1} parent=27 // pred_region
          %p261 = scmp.lt.s32.totalorder %s21, 1
          %s262 = scalar_select %p261, %s21, 1
          %s263 = scalar_lea.vmem %s2, %s262
        $region40: #{tpu_custom_call.1} parent=27 // pred_fallthru
          _
      $region28: #{tpu_custom_call.1} parent=5 // pred_fallthru
        _
      %p264 = scmp.le.s32.totalorder 1, %s21
      %p265 = scmp.lt.s32.totalorder %s21, 3
      %p266 = pnand %p264, %p265
      %p267 = pneg %p266
      // Predicated region
      $region41: #{tpu_custom_call.1} parent=5 // pred_check
        _
      $region42: #{tpu_custom_call.1} parent=5 // pred_check_branch
        %269 = sbr.rel (%p266) target = $region44
      $region43: #{tpu_custom_call.1} parent=5 // pred_region
        %s270 = ssub.s32 %s21, 1
        %s271 = sand.u32 %s34, 1
        %s272 = scalar_lea.sflag [#allocation3], %s271
        %s273 = sand.u32 %s34, 1
        %s274 = smul.addr %s273, 16
        %s275 = scalar_lea.vmem [#allocation2], %s274
        // Predicated region
        $region45: #{tpu_custom_call.1} parent=43 // pred_check
          %p276 = pneg %p47
        $region46: #{tpu_custom_call.1} parent=43 // pred_check_branch
          %278 = sbr.rel (%p276) target = $region48
        $region47: #{tpu_custom_call.1} parent=43 // pred_region
          %279 = dma.done %s272, 256
        $region48: #{tpu_custom_call.1} parent=43 // pred_fallthru
          _
        %s280 = sand.u32 %s60, 1
        %s281 = scalar_lea.sflag [#allocation6], %s280
        %s282 = sand.u32 %s60, 1
        %s283 = smul.addr %s282, 24
        %s284 = scalar_lea.vmem [#allocation5], %s283
        // Predicated region
        $region49: #{tpu_custom_call.1} parent=43 // pred_check
          %p285 = pneg %p73
        $region50: #{tpu_custom_call.1} parent=43 // pred_check_branch
          %287 = sbr.rel (%p285) target = $region52
        $region51: #{tpu_custom_call.1} parent=43 // pred_region
          %288 = dma.done %s281, 384
        $region52: #{tpu_custom_call.1} parent=43 // pred_fallthru
          _
        %s289 = sand.u32 %s34, 1
        %s290 = scalar_lea.sflag [#allocation3], %s289
        %s291 = sand.u32 %s34, 1
        %s292 = smul.addr %s291, 16
        %s293 = scalar_lea.vmem [#allocation2], %s292
        %p294 = pneg %p47
        %p295 = pneg %p44
        %s296 = sand.u32 %s60, 1
        %s297 = scalar_lea.sflag [#allocation6], %s296
        %s298 = sand.u32 %s60, 1
        %s299 = smul.addr %s298, 24
        %s300 = scalar_lea.vmem [#allocation5], %s299
        %p301 = pneg %p73
        %p302 = pneg %p70
        %p303 = scmp.lt.s32.totalorder %s26, 1
        %s304 = scalar_select %p303, %s26, 1
        %s305 = scalar_lea.vmem %s2, %s304
        %p306 = pneg %p99
        %p307 = pneg %p96
        %p308 = pneg %p120
        %p309 = pneg %p117
        %p310 = pneg %p141
        %p311 = pneg %p138
        %p312 = pneg %p162
        %p313 = pneg %p159
        %p314 = pneg %p188
        %p315 = pneg %p185
        %s316 = sand.u32 %s175, 1
        %s317 = scalar_lea.sflag [#allocation4], %s316
        %s318 = sand.u32 %s175, 1
        %s319 = smul.addr %s318, 16
        %s320 = scalar_lea.vmem [#allocation7], %s319
        %p321 = scmp.lt.s32.totalorder %s26, 1
        %s322 = scalar_select %p321, %s26, 1
        %s323 = scalar_lea.vmem %s2, %s322
        %v324 = vld [vmem:[%s275] sm:$0xff]
        %v325 = vld [vmem:[%s275 + $0x8] sm:$0xff]
        %v326 = vld [vmem:[%s284] sm:$0xff]
        %v327 = vld [vmem:[%s284 + $0x8] sm:$0xff]
        %v328 = vld [vmem:[%s284 + $0x10] sm:$0xff]
        %v329 = vld [vmem:[%s323] sm:$0x1]
        %v330 = vld [vmem:[%s3] sm:$0x1]
        %v331 = vld [vmem:[%s4] sm:$0x1]
        %v332 = vld [vmem:[%s5] sm:$0x1]
        %v334 = vlaneseq
        %v335 = vshrl.u32 %v334, 7
        %v336 = vsub.s32 0, %v335
        %v337 = vrot.slane %v330, %v336
        %v339 = vmul.f32 %v324, %v337
        %v340 = vmul.f32 %v325, %v337
        %vm341 = vcmask 261120
        %v342 = vsel %vm341, %v339, 0.0
        %343 = vadd.xlane.f32.xlu0 %v342
        %v344 = vpop.xlane.xlu0 %343
        %v345 = vsel %vm341, %v340, 0.0
        %346 = vadd.xlane.f32.xlu0 %v345
        %v347 = vpop.xlane.xlu0 %346
        %v349 = vsel %vm341, %v331, 0
        %v352 = vsel %vm341, %v326, 0
        %v355 = vsel %vm341, %v327, 0
        %v358 = vsel %vm341, %v328, 0
        %360 = vmatprep.subr.mxu0 0.0
        %361 = vmatpush1.xpose.msra.mxu0 %v352
        %362 = vmatprep.subr.mxu0 0.0
        %363 = vmatpush1.xpose.msra.mxu0 %v355
        %364 = vmatprep.subr.mxu0 0.0
        %365 = vmatpush1.xpose.msra.mxu0 %v358
        %366 = vmatprep.subr.mxu0 0.0
        %367 = vmatpush1.xpose.msra.mxu0 0.0
        %368 = vmatprep.subr.mxu0 0.0
        %369 = vmatpush1.xpose.msra.mxu0 0.0
        %370 = vmatprep.subr.mxu0 0.0
        %371 = vmatpush1.xpose.msra.mxu0 0.0
        %372 = vmatprep.subr.mxu0 0.0
        %373 = vmatpush1.xpose.msra.mxu0 0.0
        %374 = vmatprep.subr.mxu0 0.0
        %375 = vmatpush1.xpose.msra.mxu0 0.0
        %376 = vmatprep.subr.mxu0 0.0
        %377 = vmatpush1.xpose.msra.mxu0 0.0
        %378 = vmatprep.subr.mxu0 0.0
        %379 = vmatpush1.xpose.msra.mxu0 0.0
        %380 = vmatprep.subr.mxu0 0.0
        %381 = vmatpush1.xpose.msra.mxu0 0.0
        %382 = vmatprep.subr.mxu0 0.0
        %383 = vmatpush1.xpose.msra.mxu0 0.0
        %384 = vmatprep.subr.mxu0 0.0
        %385 = vmatpush1.xpose.msra.mxu0 0.0
        %386 = vmatprep.subr.mxu0 0.0
        %387 = vmatpush1.xpose.msra.mxu0 0.0
        %388 = vmatprep.subr.mxu0 0.0
        %389 = vmatpush1.xpose.msra.mxu0 0.0
        %390 = vmatprep.subr.mxu0 0.0
        %391 = vmatpush1.xpose.msra.mxu0 0.0
        %392 = vmatprep.subr.mxu0 0.0
        %393 = vmatpush1.xpose.msra.mxu0 0.0
        %394 = vmatprep.subr.mxu0 0.0
        %395 = vmatpush1.xpose.msra.mxu0 0.0
        %396 = vmatprep.subr.mxu0 0.0
        %397 = vmatpush1.xpose.msra.mxu0 0.0
        %398 = vmatprep.subr.mxu0 0.0
        %399 = vmatpush1.xpose.msra.mxu0 0.0
        %400 = vmatprep.subr.mxu0 0.0
        %401 = vmatpush1.xpose.msra.mxu0 0.0
        %402 = vmatprep.subr.mxu0 0.0
        %403 = vmatpush1.xpose.msra.mxu0 0.0
        %404 = vmatprep.subr.mxu0 0.0
        %405 = vmatpush1.xpose.msra.mxu0 0.0
        %406 = vmatprep.subr.mxu0 0.0
        %407 = vmatpush1.xpose.msra.mxu0 0.0
        %408 = vmatprep.subr.mxu0 0.0
        %409 = vmatpush1.xpose.msra.mxu0 0.0
        %410 = vmatprep.subr.mxu0 0.0
        %411 = vmatpush1.xpose.msra.mxu0 0.0
        %412 = vmatprep.subr.mxu0 0.0
        %413 = vmatpush1.xpose.msra.mxu0 0.0
        %414 = vmatprep.subr.mxu0 0.0
        %415 = vmatpush1.xpose.msra.mxu0 0.0
        %416 = vmatprep.subr.mxu0 0.0
        %417 = vmatpush1.xpose.msra.mxu0 0.0
        %418 = vmatprep.subr.mxu0 0.0
        %419 = vmatpush1.xpose.msra.mxu0 0.0
        %420 = vmatprep.subr.mxu0 0.0
        %421 = vmatpush1.xpose.msra.mxu0 0.0
        %422 = vmatprep.subr.mxu0 0.0
        %423 = vmatpush1.xpose.msra.mxu0 0.0
        %424 = vmatprep.mubr.f32.mxu0 0.0
        %425 = vmatmul.mubr.f32.gmra.mrb[0].mxu0 %v349
        %v426 = vpop.f32.mrb[0].mxu0
        %v427 = vadd.f32 0.0, %v426
        %v428 = vpop.f32.mrb[0].mxu0
        %429 = vdwg.mxu0
        %v431 = vlaneseq
        %v432 = vshrl.u32 %v431, 7
        %v433 = vsub.s32 0, %v432
        %v434 = vrot.slane %v332, %v433
        %v436 = vmul.f32 %v324, %v434
        %v437 = vmul.f32 %v325, %v434
        %v439 = vsel %vm341, %v436, 0
        %v442 = vsel %vm341, %v437, 0
        %444 = vmatprep.subr.mxu0 0.0
        %445 = vmatpush1.xpose.msra.mxu0 %v352
        %446 = vmatprep.subr.mxu0 0.0
        %447 = vmatpush1.xpose.msra.mxu0 %v355
        %448 = vmatprep.subr.mxu0 0.0
        %449 = vmatpush1.xpose.msra.mxu0 %v358
        %450 = vmatprep.subr.mxu0 0.0
        %451 = vmatpush1.xpose.msra.mxu0 0.0
        %452 = vmatprep.subr.mxu0 0.0
        %453 = vmatpush1.xpose.msra.mxu0 0.0
        %454 = vmatprep.subr.mxu0 0.0
        %455 = vmatpush1.xpose.msra.mxu0 0.0
        %456 = vmatprep.subr.mxu0 0.0
        %457 = vmatpush1.xpose.msra.mxu0 0.0
        %458 = vmatprep.subr.mxu0 0.0
        %459 = vmatpush1.xpose.msra.mxu0 0.0
        %460 = vmatprep.subr.mxu0 0.0
        %461 = vmatpush1.xpose.msra.mxu0 0.0
        %462 = vmatprep.subr.mxu0 0.0
        %463 = vmatpush1.xpose.msra.mxu0 0.0
        %464 = vmatprep.subr.mxu0 0.0
        %465 = vmatpush1.xpose.msra.mxu0 0.0
        %466 = vmatprep.subr.mxu0 0.0
        %467 = vmatpush1.xpose.msra.mxu0 0.0
        %468 = vmatprep.subr.mxu0 0.0
        %469 = vmatpush1.xpose.msra.mxu0 0.0
        %470 = vmatprep.subr.mxu0 0.0
        %471 = vmatpush1.xpose.msra.mxu0 0.0
        %472 = vmatprep.subr.mxu0 0.0
        %473 = vmatpush1.xpose.msra.mxu0 0.0
        %474 = vmatprep.subr.mxu0 0.0
        %475 = vmatpush1.xpose.msra.mxu0 0.0
        %476 = vmatprep.subr.mxu0 0.0
        %477 = vmatpush1.xpose.msra.mxu0 0.0
        %478 = vmatprep.subr.mxu0 0.0
        %479 = vmatpush1.xpose.msra.mxu0 0.0
        %480 = vmatprep.subr.mxu0 0.0
        %481 = vmatpush1.xpose.msra.mxu0 0.0
        %482 = vmatprep.subr.mxu0 0.0
        %483 = vmatpush1.xpose.msra.mxu0 0.0
        %484 = vmatprep.subr.mxu0 0.0
        %485 = vmatpush1.xpose.msra.mxu0 0.0
        %486 = vmatprep.subr.mxu0 0.0
        %487 = vmatpush1.xpose.msra.mxu0 0.0
        %488 = vmatprep.subr.mxu0 0.0
        %489 = vmatpush1.xpose.msra.mxu0 0.0
        %490 = vmatprep.subr.mxu0 0.0
        %491 = vmatpush1.xpose.msra.mxu0 0.0
        %492 = vmatprep.subr.mxu0 0.0
        %493 = vmatpush1.xpose.msra.mxu0 0.0
        %494 = vmatprep.subr.mxu0 0.0
        %495 = vmatpush1.xpose.msra.mxu0 0.0
        %496 = vmatprep.subr.mxu0 0.0
        %497 = vmatpush1.xpose.msra.mxu0 0.0
        %498 = vmatprep.subr.mxu0 0.0
        %499 = vmatpush1.xpose.msra.mxu0 0.0
        %500 = vmatprep.subr.mxu0 0.0
        %501 = vmatpush1.xpose.msra.mxu0 0.0
        %502 = vmatprep.subr.mxu0 0.0
        %503 = vmatpush1.xpose.msra.mxu0 0.0
        %504 = vmatprep.subr.mxu0 0.0
        %505 = vmatpush1.xpose.msra.mxu0 0.0
        %506 = vmatprep.subr.mxu0 0.0
        %507 = vmatpush1.xpose.msra.mxu0 0.0
        %508 = vmatprep.mubr.f32.mxu0 0.0
        %509 = vmatmul.mubr.f32.gmra.mrb[0].mxu0 %v439
        %v510 = vpop.f32.mrb[0].mxu0
        %v511 = vadd.f32 0.0, %v510
        %v512 = vpop.f32.mrb[0].mxu0
        %513 = vmatprep.mubr.f32.mxu0 0.0
        %514 = vmatmul.mubr.f32.gmra.mrb[0].mxu0 %v442
        %v515 = vpop.f32.mrb[0].mxu0
        %v516 = vadd.f32 0.0, %v515
        %v517 = vpop.f32.mrb[0].mxu0
        %518 = vdwg.mxu0
        %v519 = vlaneseq
        %v520 = vshrl.u32 %v519, 7
        %v521 = vsub.s32 0, %v520
        %v522 = vrot.slane %v427, %v521
        %v523 = vadd.f32 %v344, %v522
        %v524 = vadd.f32 %v347, %v522
        %v525 = vadd.f32 %v523, %v511
        %v526 = vadd.f32 %v524, %v516
        %v527 = vsub.f32 1.0, %v329
        %v528 = vmul.f32 %v527, 1e+30
        %v530 = vlaneseq
        %v531 = vshrl.u32 %v530, 7
        %v532 = vsub.s32 0, %v531
        %v533 = vrot.slane %v528, %v532
        %v535 = vsub.f32 %v525, %v533
        %v536 = vsub.f32 %v526, %v533
        %vm537 = vcmask 195584
        %v538 = vsel %vm537, %v535, -inf
        %539 = vmax.xlane.f32.xlu0 %v538
        %v540 = vpop.xlane.xlu0 %539
        %v541 = vsel %vm537, %v536, -inf
        %542 = vmax.xlane.f32.xlu0 %v541
        %v543 = vpop.xlane.xlu0 %542
        %v544 = vsub.f32 %v535, %v540
        %v545 = vsub.f32 %v536, %v543
        %v546 = vmul.f32 %v544, 1.442695
        %v547 = vpow.pop %v546
        %v548 = vmul.f32 %v545, 1.442695
        %v549 = vpow.pop %v548
        %v550 = vsel %vm537, %v547, 0.0
        %551 = vadd.xlane.f32.xlu0 %v550
        %v552 = vpop.xlane.xlu0 %551
        %v553 = vsel %vm537, %v549, 0.0
        %554 = vadd.xlane.f32.xlu0 %v553
        %v555 = vpop.xlane.xlu0 %554
        %v556 = vrcp.pop %v552
        %v557 = vrcp.pop %v555
        %v558 = vmul.f32 %v547, %v556
        %v559 = vmul.f32 %v549, %v557
        %v561 = vsel %vm537, %v558, 0
        %v564 = vsel %vm537, %v559, 0
        %566 = vmatprep.subr.mxu0 0.0
        %567 = vmatpush1.msra.mxu0 %v326
        %568 = vmatprep.subr.mxu0 0.0
        %569 = vmatpush1.msra.mxu0 %v327
        %570 = vmatprep.subr.mxu0 0.0
        %571 = vmatpush1.msra.mxu0 %v328
        %572 = vmatprep.subr.mxu0 0.0
        %573 = vmatpush1.msra.mxu0 0.0
        %574 = vmatprep.subr.mxu0 0.0
        %575 = vmatpush1.msra.mxu0 0.0
        %576 = vmatprep.subr.mxu0 0.0
        %577 = vmatpush1.msra.mxu0 0.0
        %578 = vmatprep.subr.mxu0 0.0
        %579 = vmatpush1.msra.mxu0 0.0
        %580 = vmatprep.subr.mxu0 0.0
        %581 = vmatpush1.msra.mxu0 0.0
        %582 = vmatprep.subr.mxu0 0.0
        %583 = vmatpush1.msra.mxu0 0.0
        %584 = vmatprep.subr.mxu0 0.0
        %585 = vmatpush1.msra.mxu0 0.0
        %586 = vmatprep.subr.mxu0 0.0
        %587 = vmatpush1.msra.mxu0 0.0
        %588 = vmatprep.subr.mxu0 0.0
        %589 = vmatpush1.msra.mxu0 0.0
        %590 = vmatprep.subr.mxu0 0.0
        %591 = vmatpush1.msra.mxu0 0.0
        %592 = vmatprep.subr.mxu0 0.0
        %593 = vmatpush1.msra.mxu0 0.0
        %594 = vmatprep.subr.mxu0 0.0
        %595 = vmatpush1.msra.mxu0 0.0
        %596 = vmatprep.subr.mxu0 0.0
        %597 = vmatpush1.msra.mxu0 0.0
        %598 = vmatprep.subr.mxu0 0.0
        %599 = vmatpush1.msra.mxu0 0.0
        %600 = vmatprep.subr.mxu0 0.0
        %601 = vmatpush1.msra.mxu0 0.0
        %602 = vmatprep.subr.mxu0 0.0
        %603 = vmatpush1.msra.mxu0 0.0
        %604 = vmatprep.subr.mxu0 0.0
        %605 = vmatpush1.msra.mxu0 0.0
        %606 = vmatprep.subr.mxu0 0.0
        %607 = vmatpush1.msra.mxu0 0.0
        %608 = vmatprep.subr.mxu0 0.0
        %609 = vmatpush1.msra.mxu0 0.0
        %610 = vmatprep.subr.mxu0 0.0
        %611 = vmatpush1.msra.mxu0 0.0
        %612 = vmatprep.subr.mxu0 0.0
        %613 = vmatpush1.msra.mxu0 0.0
        %614 = vmatprep.subr.mxu0 0.0
        %615 = vmatpush1.msra.mxu0 0.0
        %616 = vmatprep.subr.mxu0 0.0
        %617 = vmatpush1.msra.mxu0 0.0
        %618 = vmatprep.subr.mxu0 0.0
        %619 = vmatpush1.msra.mxu0 0.0
        %620 = vmatprep.subr.mxu0 0.0
        %621 = vmatpush1.msra.mxu0 0.0
        %622 = vmatprep.subr.mxu0 0.0
        %623 = vmatpush1.msra.mxu0 0.0
        %624 = vmatprep.subr.mxu0 0.0
        %625 = vmatpush1.msra.mxu0 0.0
        %626 = vmatprep.subr.mxu0 0.0
        %627 = vmatpush1.msra.mxu0 0.0
        %628 = vmatprep.subr.mxu0 0.0
        %629 = vmatpush1.msra.mxu0 0.0
        %630 = vmatprep.mubr.f32.mxu0 0.0
        %631 = vmatmul.mubr.f32.gmra.mrb[0].mxu0 %v561
        %v632 = vpop.f32.mrb[0].mxu0
        %v633 = vadd.f32 0.0, %v632
        %v634 = vpop.f32.mrb[0].mxu0
        %635 = vmatprep.mubr.f32.mxu0 0.0
        %636 = vmatmul.mubr.f32.gmra.mrb[0].mxu0 %v564
        %v637 = vpop.f32.mrb[0].mxu0
        %v638 = vadd.f32 0.0, %v637
        %v639 = vpop.f32.mrb[0].mxu0
        %640 = vdwg.mxu0
        %v641 = vmax.f32 %v540, %v543
        %v642 = vrot.slane %v641, 4
        %v643 = vmax.f32 %v641, %v642
        %v644 = vrot.slane %v643, 2
        %v645 = vmax.f32 %v643, %v644
        %v646 = vrot.slane %v645, 1
        %v647 = vmax.f32 %v645, %v646
        %v648 = vsub.f32 %v540, %v647
        %v649 = vsub.f32 %v543, %v647
        %v650 = vmul.f32 %v648, 1.442695
        %v651 = vpow.pop %v650
        %v652 = vmul.f32 %v649, 1.442695
        %v653 = vpow.pop %v652
        %v654 = vadd.f32 %v651, %v653
        %v655 = vrot.slane %v654, 4
        %v656 = vadd.f32 %v654, %v655
        %v657 = vrot.slane %v656, 2
        %v658 = vadd.f32 %v656, %v657
        %v659 = vrot.slane %v658, 1
        %v660 = vadd.f32 %v658, %v659
        %v661 = vrcp.pop %v660
        %v662 = vmul.f32 %v651, %v661
        %v663 = vmul.f32 %v653, %v661
        %v664 = vmul.f32 %v662, %v324
        %v665 = vmul.f32 %v663, %v325
        %v666 = vsel %vm341, %v664, 0.0
        %v667 = vsel %vm341, %v665, 0.0
        %v668 = vadd.f32 %v666, %v667
        %v669 = vrot.slane %v668, 4
        %v670 = vadd.f32 %v668, %v669
        %v671 = vrot.slane %v670, 2
        %v672 = vadd.f32 %v670, %v671
        %v673 = vrot.slane %v672, 1
        %v674 = vadd.f32 %v672, %v673
        %v675 = vmul.f32 %v324, %v633
        %v676 = vmul.f32 %v325, %v638
        %v677 = vmul.f32 %v674, %v633
        %v678 = vmul.f32 %v674, %v638
        %681 = vrot.lane.b32.xlu0 %v633, 32
        %v682 = vpop.permute.xlu0 %681
        %683 = vrot.lane.b32.xlu0 %v638, 32
        %v684 = vpop.permute.xlu0 %683
        %689 = vrot.lane.b32.xlu0 %v675, 64
        %v690 = vpop.permute.xlu0 %689
        %691 = vrot.lane.b32.xlu0 %v676, 64
        %v692 = vpop.permute.xlu0 %691
        %697 = vrot.lane.b32.xlu0 %v677, 96
        %v698 = vpop.permute.xlu0 %697
        %699 = vrot.lane.b32.xlu0 %v678, 96
        %v700 = vpop.permute.xlu0 %699
        %v703 = vsel %vm341, %v324, %v682
        %v704 = vsel %vm341, %v325, %v684
        %vm705 = vcmask 523264
        %v706 = vsel %vm705, %v703, %v690
        %v707 = vsel %vm705, %v704, %v692
        %vm708 = vcmask 785408
        %v709 = vsel %vm708, %v706, %v698
        %v710 = vsel %vm708, %v707, %v700
        %711 = vst [vmem:[%s320] sm:$0xff] %v709
        %712 = vst [vmem:[%s320 + $0x8] sm:$0xff] %v710
        %s713 = sand.u32 %s175, 1
        %s714 = scalar_lea.sflag [#allocation4], %s713
        %s715 = sand.u32 %s175, 1
        %s716 = smul.addr %s715, 16
        %s717 = scalar_lea.vmem [#allocation7], %s716
        // Predicated region
        $region53: #{tpu_custom_call.1} parent=43 // pred_check
          %p718 = pneg %p185
        $region54: #{tpu_custom_call.1} parent=43 // pred_check_branch
          %720 = sbr.rel (%p718) target = $region56
        $region55: #{tpu_custom_call.1} parent=43 // pred_region
          %s722 = ssub.s32 256, 256
          %723 = vsyncadd %s714, %s722
          %s724 = smul.addr %s26, 2
          %s725 = smul.addr %s724, 128
          %s726 = scalar_lea.hbm %s6, %s725
          %s727 = sshll.u32 %s717, 4
          %s728 = int_to_ptr.vmem [resolvable:$true] %s727
          %733 = dma.vmem_to_hbm [thread:$0]  %s728, 256, %s726, %s714, 128, 128, 8
        $region56: #{tpu_custom_call.1} parent=43 // pred_fallthru
          _
      $region44: #{tpu_custom_call.1} parent=5 // pred_fallthru
        _
      %p734 = scmp.le.s32.totalorder 2, %s21
      // Predicated region
      $region57: #{tpu_custom_call.1} parent=5 // pred_check
        %p735 = pneg %p734
      $region58: #{tpu_custom_call.1} parent=5 // pred_check_branch
        %737 = sbr.rel (%p735) target = $region60
      $region59: #{tpu_custom_call.1} parent=5 // pred_region
        %s738 = ssub.s32 %s21, 2
        // Predicated region
        $region61: #{tpu_custom_call.1} parent=59 // pred_check
          %p739 = pneg %p191
        $region62: #{tpu_custom_call.1} parent=59 // pred_check_branch
          %741 = sbr.rel (%p739) target = $region64
        $region63: #{tpu_custom_call.1} parent=59 // pred_region
          %s742 = sand.u32 %s176, 1
          %s743 = scalar_lea.sflag [#allocation4], %s742
          %s744 = sand.u32 %s176, 1
          %s745 = smul.addr %s744, 16
          %s746 = scalar_lea.vmem [#allocation7], %s745
          %747 = dma.done %s743, 256
        $region64: #{tpu_custom_call.1} parent=59 // pred_fallthru
          _
      $region60: #{tpu_custom_call.1} parent=5 // pred_fallthru
        _
    $region6: #{tpu_custom_call.1} parent=1 // loop_footer
      %s25 = sadd.s32 1, %s21
    $region7: #{tpu_custom_call.1} parent=1 // loop_footer_branch
      %20 = sbr.rel target = $region3
    $region8: #{tpu_custom_call.1} parent=1 // loop_exit
      _
    %748 = vsyncpa [#allocation3], 1
    %s749 = scalar_lea.sflag [#allocation3], 1
    %750 = vsyncpa %s749, 1
    %751 = vsyncpa [#allocation6], 1
    %s752 = scalar_lea.sflag [#allocation6], 1
    %753 = vsyncpa %s752, 1
    %754 = vsyncpa [#allocation4], 1
    %s755 = scalar_lea.sflag [#allocation4], 1
    %756 = vsyncpa %s755, 1

</llo_original>
